<compile_context>
chip_gen: v6e
topology: v6e:2x2x1
jax: 0.10.0
libtpu: 0.0.40
codegen_flags: <defaults>
</compile_context>

<pallas_src>
import jax
import jax.numpy as jnp
import numpy as np
from jax.experimental import pallas as pl
from jax.experimental.pallas import tpu as pltpu


# ----------------------------- helpers -----------------------------

LANE = 128


def _round_up(x, m=LANE):
    return ((x + m - 1) // m) * m


def _pad2(a, shape):
    return jnp.pad(a, [(0, s - d) for d, s in zip(a.shape, shape)])


def _choose_row_tile(n, target=512):
    """Largest row tile <= target that is a multiple of 8 and divides n."""
    if n <= target:
        return n
    start = (min(target, n) // 8) * 8
    for tm in range(start, 0, -8):
        if n % tm == 0:
            return tm
    return n  # fallback: full-dim block (always legal)


def _vmem_limit_bytes(tm, n):
    # double-buffered bf16 Â row tiles + resident bf16 projections/weights
    # + f32 output row tiles, with 2x margin; clamp to a range that is safe
    # on v5e/v6e (128 MiB physical) and v7x (64 MiB physical).
    need = (2 * tm * n * 2          # Â tiles, double buffered, bf16
            + 2 * n * LANE * 2      # resident XW1 / HW2
            + 8 * LANE * LANE * 2   # weights
            + 6 * tm * LANE * 4)    # output tiles, double buffered, f32
    return int(min(64 * 1024 * 1024, max(32 * 1024 * 1024, 2 * need)))


# ----------------------------- Pallas kernels -----------------------------

def _proj_kernel(x_ref, w_ref, xw_ref):
    # XW1 = X @ W1 (row tile of X, resident W1); stored bf16 for the MXU path.
    xw_ref[...] = jnp.dot(
        x_ref[...], w_ref[...], preferred_element_type=jnp.float32
    ).astype(xw_ref.dtype)


def _gcn1_kernel(a_ref, xw1_ref, b1_ref, w2_ref, hw2_ref):
    # a_ref: (tm, N) bf16 row tile of Â ; xw1_ref: (N, H1P) bf16 resident.
    h = jnp.dot(a_ref[...], xw1_ref[...], preferred_element_type=jnp.float32)
    h = jnp.maximum(h + b1_ref[...], 0.0).astype(jnp.bfloat16)
    # Fuse the second GCN projection (row-wise), so pass 2 only streams Â again.
    hw2_ref[...] = jnp.dot(
        h, w2_ref[...], preferred_element_type=jnp.float32
    ).astype(hw2_ref.dtype)


def _gcn2_heads_kernel(a_ref, hw2_ref, b2_ref,
                       wc_ref, bc_ref,
                       wd1_ref, bd1_ref, wd2_ref, bd2_ref, wd3_ref, bd3_ref,
                       emb_ref, pred_ref, dlog_ref):
    # emb = Â · HW2 + b2   (final GCNConv, no activation)
    e = jnp.dot(a_ref[...], hw2_ref[...], preferred_element_type=jnp.float32)
    e = e + b2_ref[...]
    emb_ref[...] = e
    e_bf = e.astype(jnp.bfloat16)

    # NodeClassifier (lane-dense 128-wide padded output)
    pred_ref[...] = (jnp.dot(e_bf, wc_ref[...], preferred_element_type=jnp.float32)
                     + bc_ref[...])

    # GRL is identity in forward; DomainDiscriminator: Linear+ReLU ×2, Linear.
    g = jnp.maximum(
        jnp.dot(e_bf, wd1_ref[...], preferred_element_type=jnp.float32) + bd1_ref[...],
        0.0).astype(jnp.bfloat16)
    g = jnp.maximum(
        jnp.dot(g, wd2_ref[...], preferred_element_type=jnp.float32) + bd2_ref[...],
        0.0).astype(jnp.bfloat16)
    dlog_ref[...] = (jnp.dot(g, wd3_ref[...], preferred_element_type=jnp.float32)
                     + bd3_ref[...])


# ----------------------------- forward wrapper -----------------------------

def acdne_forward(a_hat, x, params, *, row_tile=None):
    N, F = x.shape
    h1 = params["w1"].shape[1]
    n_emb = params["w2"].shape[1]
    num_class = params["wc"].shape[1]
    n_dom = params["wd3"].shape[1]
    dh = params["wd2"].shape[0]              # discriminator hidden (128)

    H1P = _round_up(h1)
    H2P = _round_up(n_emb)
    CP = _round_up(num_class)
    DP = _round_up(n_dom)
    DH = _round_up(dh)
    assert dh == DH, "discriminator hidden expected to be a multiple of 128"

    tm = row_tile if row_tile is not None else _choose_row_tile(N)
    assert N % tm == 0 and (tm % 8 == 0 or tm == N), "bad row tile"
    grid = (N // tm,)

    bf = jnp.bfloat16
    a_bf = a_hat.astype(bf)
    x_bf = x.astype(bf)

    # Zero-pad all feature dims to 128-lane multiples (free: padded lanes are 0).
    w1p = _pad2(params["w1"], (F, H1P)).astype(bf)
    b1p = _pad2(params["b1"], (1, H1P))
    w2p = _pad2(params["w2"], (H1P, H2P)).astype(bf)
    b2p = _pad2(params["b2"], (1, H2P))
    wcp = _pad2(params["wc"], (H2P, CP)).astype(bf)
    bcp = _pad2(params["bc"], (1, CP))
    wd1p = _pad2(params["wd1"], (H2P, DH)).astype(bf)
    bd1p = _pad2(params["bd1"], (1, DH))
    wd2p = params["wd2"].astype(bf)
    bd2p = params["bd2"]
    wd3p = _pad2(params["wd3"], (DH, DP)).astype(bf)
    bd3p = _pad2(params["bd3"], (1, DP))

    cparams = pltpu.CompilerParams(
        dimension_semantics=("parallel",),
        vmem_limit_bytes=_vmem_limit_bytes(tm, N),
    )

    def row_spec(last):          # streamed / written per row tile
        return pl.BlockSpec((tm, last), lambda i: (i, 0))

    def res_spec(shape):         # resident: same block every grid step (no re-DMA)
        return pl.BlockSpec(shape, lambda i: (0, 0))

    # ---- pass 0: XW1 = X @ W1 ----
    xw1 = pl.pallas_call(
        _proj_kernel,
        grid=grid,
        in_specs=[row_spec(F), res_spec((F, H1P))],
        out_specs=row_spec(H1P),
        out_shape=jax.ShapeDtypeStruct((N, H1P), bf),
        compiler_params=cparams,
    )(x_bf, w1p)

    # ---- pass 1: HW2 = relu(Â·XW1 + b1) @ W2  (streams Â row tiles) ----
    hw2 = pl.pallas_call(
        _gcn1_kernel,
        grid=grid,
        in_specs=[row_spec(N), res_spec((N, H1P)),
                  res_spec((1, H1P)), res_spec((H1P, H2P))],
        out_specs=row_spec(H2P),
        out_shape=jax.ShapeDtypeStruct((N, H2P), bf),
        compiler_params=cparams,
    )(a_bf, xw1, b1p, w2p)

    # ---- pass 2: emb = Â·HW2 + b2, fused classifier + discriminator ----
    emb_p, pred_p, dlog_p = pl.pallas_call(
        _gcn2_heads_kernel,
        grid=grid,
        in_specs=[row_spec(N), res_spec((N, H2P)), res_spec((1, H2P)),
                  res_spec((H2P, CP)), res_spec((1, CP)),
                  res_spec((H2P, DH)), res_spec((1, DH)),
                  res_spec((DH, DH)), res_spec((1, DH)),
                  res_spec((DH, DP)), res_spec((1, DP))],
        out_specs=(row_spec(H2P), row_spec(CP), row_spec(DP)),
        out_shape=(jax.ShapeDtypeStruct((N, H2P), jnp.float32),
                   jax.ShapeDtypeStruct((N, CP), jnp.float32),
                   jax.ShapeDtypeStruct((N, DP), jnp.float32)),
        compiler_params=cparams,
    )(a_bf, hw2, b2p, wcp, bcp, wd1p, bd1p, wd2p, bd2p, wd3p, bd3p)

    # Slice the lane-dense padded slabs back to the model's true widths.
    return emb_p[:, :n_emb], pred_p[:, :num_class], dlog_p[:, :n_dom]


# ----------------------------- JAX glue -----------------------------

def build_norm_adj(edge_index, num_nodes):
    """Densified GCN normalization: Â = D^-1/2 (A + I) D^-1/2 (unit edge weights)."""
    src, dst = edge_index[0], edge_index[1]
    loops = jnp.arange(num_nodes)
    src = jnp.concatenate([src, loops])
    dst = jnp.concatenate([dst, loops])
    A = jnp.zeros((num_nodes, num_nodes), jnp.float32).at[dst, src].add(1.0)
    deg = A.sum(axis=1)
    dinv = jnp.where(deg > 0, 1.0 / jnp.sqrt(deg), 0.0)
    return dinv[:, None] * A * dinv[None, :]


def trunc_normal(key, shape, std):
    return (std * jax.random.truncated_normal(key, -2.0, 2.0, shape)).astype(jnp.float32)


def init_params(key, n_input, n_hidden, n_emb, num_class):
    # n_hidden = [hid, out] -> one hidden GCN layer + final GCN layer
    h1, h2 = n_hidden
    k = jax.random.split(key, 6)
    std_emb = 1.0 / (n_emb / 2) ** 0.5
    glorot1 = (2.0 / (n_input + h1)) ** 0.5
    glorot2 = (2.0 / (h1 + h2)) ** 0.5
    return dict(
        # GCNConv weights (pre-transposed to (in, out)); bias zero (PyG default)
        w1=(jax.random.normal(k[0], (n_input, h1)) * glorot1).astype(jnp.float32),
        b1=jnp.zeros((1, h1), jnp.float32),
        w2=(jax.random.normal(k[1], (h1, h2)) * glorot2).astype(jnp.float32),
        b2=jnp.zeros((1, h2), jnp.float32),
        # NodeClassifier: trunc_normal(std=1/sqrt(n_emb/2)), bias 0.1
        wc=trunc_normal(k[2], (n_emb, num_class), std_emb),
        bc=jnp.full((1, num_class), 0.1, jnp.float32),
        # DomainDiscriminator
        wd1=trunc_normal(k[3], (n_emb, 128), std_emb),
        bd1=jnp.full((1, 128), 0.1, jnp.float32),
        wd2=trunc_normal(k[4], (128, 128), 0.125),
        bd2=jnp.full((1, 128), 0.1, jnp.float32),
        wd3=trunc_normal(k[5], (128, 2), 0.125),
        bd3=jnp.full((1, 2), 0.1, jnp.float32),
    )


def reference_forward(a_hat, x, p):
    h = jnp.maximum(a_hat @ (x @ p["w1"]) + p["b1"], 0.0)
    emb = a_hat @ (h @ p["w2"]) + p["b2"]
    pred = emb @ p["wc"] + p["bc"]
    g = jnp.maximum(emb @ p["wd1"] + p["bd1"], 0.0)
    g = jnp.maximum(g @ p["wd2"] + p["bd2"], 0.0)
    dlog = g @ p["wd3"] + p["bd3"]
    return emb, pred, dlog


# ----------------------------- main -----------------------------

if __name__ == "__main__":
    key = jax.random.PRNGKey(0)
    N, E = 32, 64                       # nodes, edges
    n_input = 16
    n_hidden = [32, 16]                 # [hid, emb] -> GCN: 16 -> 32 -> 16
    n_emb = 16
    num_class = 4

    k_src, k_dst, k_x, k_p = jax.random.split(key, 4)
    edge_index = jnp.stack([
        jax.random.randint(k_src, (E,), 0, N),
        jax.random.randint(k_dst, (E,), 0, N),
    ])
    x = jax.random.normal(k_x, (N, n_input), jnp.float32)
    params = init_params(k_p, n_input, n_hidden, n_emb, num_class)

    a_hat = build_norm_adj(edge_index, N)

    # row_tile=8 -> 4 pipelined grid steps even at this toy N.
    emb, pred_logit, d_logit = jax.block_until_ready(
        acdne_forward(a_hat, x, params, row_tile=8))

    assert emb.shape == (N, n_emb)
    assert pred_logit.shape == (N, num_class)
    assert d_logit.shape == (N, 2)

    # bf16 matmul operands (f32 accumulation) vs pure-f32 reference -> loose tol.
    emb_r, pred_r, dlog_r = reference_forward(a_hat, x, params)
    np.testing.assert_allclose(np.asarray(emb), np.asarray(emb_r), rtol=5e-2, atol=5e-2)
    np.testing.assert_allclose(np.asarray(pred_logit), np.asarray(pred_r), rtol=5e-2, atol=5e-2)
    np.testing.assert_allclose(np.asarray(d_logit), np.asarray(dlog_r), rtol=5e-2, atol=5e-2)

    print("KERNEL_OK")
</pallas_src>

<mosaic_0001>
module attributes {stable_mosaic.version = 11 : i64} {
  func.func @_proj_kernel(%arg0: i32, %arg1: memref<8x16xbf16, #tpu.memory_space<vmem>>, %arg2: memref<16x128xbf16, #tpu.memory_space<vmem>>, %arg3: memref<8x128xbf16, #tpu.memory_space<vmem>>) attributes {dimension_semantics = [#tpu.dimension_semantics<parallel>], iteration_bounds = array<i64: 4>, scalar_prefetch = 0 : i64, scratch_operands = 0 : i64, tpu.core_type = #tpu.core_type<tc>, window_params = [{transform_indices = @transform_0, window_bounds = array<i64: 8, 16>}, {pipeline_mode = #tpu.pipeline_mode<synchronous>, transform_indices = @transform_1, window_bounds = array<i64: 16, 128>}, {transform_indices = @transform_2, window_bounds = array<i64: 8, 128>}]} {
    %c0 = arith.constant 0 : index
    %c0_0 = arith.constant 0 : index
    %0 = vector.load %arg1[%c0, %c0_0] : memref<8x16xbf16, #tpu.memory_space<vmem>>, vector<8x16xbf16>
    %c0_1 = arith.constant 0 : index
    %c0_2 = arith.constant 0 : index
    %1 = vector.load %arg2[%c0_1, %c0_2] : memref<16x128xbf16, #tpu.memory_space<vmem>>, vector<16x128xbf16>
    %cst = arith.constant dense<0.000000e+00> : vector<8x128xf32>
    %2 = tpu.matmul %0, %1, %cst {dimension_numbers = #tpu.dot_dimension_numbers<[1], [0], [0], [1], [0, 0, 1, 1], [], []>} : vector<8x16xbf16>, vector<16x128xbf16>, vector<8x128xf32> -> vector<8x128xf32>
    %3 = arith.truncf %2 : vector<8x128xf32> to vector<8x128xbf16>
    %c0_3 = arith.constant 0 : index
    %c0_4 = arith.constant 0 : index
    %4 = vector.load %arg3[%c0_3, %c0_4] : memref<8x128xbf16, #tpu.memory_space<vmem>>, vector<8x128xbf16>
    tpu.vector_store %arg3[%c0_3, %c0_4], %3 {strides = array<i32>} : memref<8x128xbf16, #tpu.memory_space<vmem>>, vector<8x128xbf16>,
    return
  }
  func.func @transform_0(%arg0: i32) -> (i32, i32) {
    %c0_i32 = arith.constant 0 : i32
    %c0_i32_0 = arith.constant 0 : i32
    return %arg0, %c0_i32 : i32, i32
  }
  func.func @transform_1(%arg0: i32) -> (i32, i32) {
    %c0_i32 = arith.constant 0 : i32
    %c0_i32_0 = arith.constant 0 : i32
    %c0_i32_1 = arith.constant 0 : i32
    return %c0_i32, %c0_i32_0 : i32, i32
  }
  func.func @transform_2(%arg0: i32) -> (i32, i32) {
    %c0_i32 = arith.constant 0 : i32
    %c0_i32_0 = arith.constant 0 : i32
    return %arg0, %c0_i32 : i32, i32
  }
}

</mosaic_0001>

<llo_original>
// kernel: tpu_custom_call.1
$region0: #{tpu_custom_call.1}
  #allocation0 [shape = 'u32[]', space=smem, size = 0x4, offset = 0x4, fixed_abs, tag = 'smem constant byte address 0x4 - core index']
  #allocation1 [shape = 'u32[144,128]{1,0:T(1,128)}', space=vmem, size = 0x12000, scoped, tag = 'internal scratch']
  %s0 = inlined_call_operand.vmem [shape: bf16[32,16], index: 0, kind: input, shape index: {}]
  %s1 = inlined_call_operand.vmem [shape: bf16[16,128], index: 1, kind: input, shape index: {}]
  %s2 = inlined_call_operand.hbm [shape: bf16[32,128], index: 2, kind: output, shape index: {}]
  %s3 = sld [smem:[#allocation0]]
  $region41: #{tpu_custom_call.1} parent=0
    _
  %s5 = ssub.s32 1, %s3
  %s6 = scalar_select 0, %s5, %s3
  $region1: #{tpu_custom_call.1} parent=0
    #allocation2 [shape = 'u8[4096]{0}', space=vmem, size = 0x1000, scoped, tag = 'output window, operand 0']
    #allocation3 [shape = 's32[2]{0}', space=sflag, size = 0x8, scoped, tag = 'scoped memory for tpu_custom_call.1']
    %7 = vsyncpa [#allocation3], 0
    %s8 = scalar_lea.sflag [#allocation3], 1
    %9 = vsyncpa %s8, 0
    loop: start=0, step=1, limit=6
    $region2: #{tpu_custom_call.1} parent=1 // loop_pre_header
      _
    $region3: #{tpu_custom_call.1} parent=1 // loop_header
      %s11 = sphi 0, %s15
      %p12 = scmp.ge.s32.totalorder %s11, 6
      %s21 = sphi 0, %s23
      %s24 = sphi 0, %s21
      %s25 = sphi 0, %s24
      %s41 = sphi 0, %s25
      %s45 = sphi 0, %s45
      %s47 = sphi 0, %s45
      %s48 = sphi 0, %s47
      %s62 = sphi 0, %s48
      %s68 = sphi 0, %s70
      %s71 = sphi 0, %s68
      %s72 = sphi 0, %s71
      %s88 = sphi 0, %s72
    $region4: #{tpu_custom_call.1} parent=1 // loop_header_branch
      %14 = sbr.rel (%p12) target = $region8
    $region5: #{tpu_custom_call.1} parent=1 // loop_body
      %s16 = ssub.s32 %s11, 1
      %s17 = ssub.s32 %s11, 2
      %s18 = sadd.s32 %s11, 1
      %s19 = ssub.s32 %s11, %s18
      %p20 = scmp.eq.s32.totalorder %s19, 0
      %s22 = sadd.s32 %s21, 1
      %s23 = scalar_select %p20, %s21, %s22
      %p26 = pneg %p20
      %p27 = scmp.eq.s32.totalorder %s11, 3
      %p28 = por %p26, %p27
      %p29 = scmp.ne.s32.totalorder %s21, %s24
      %p30 = scmp.eq.s32.totalorder %s11, 0
      %p31 = por %p29, %p30
      %p32 = scmp.ne.s32.totalorder %s21, %s24
      %p33 = scmp.eq.s32.totalorder %s16, 3
      %p34 = por %p32, %p33
      %p35 = scmp.ne.s32.totalorder %s24, %s25
      %p36 = scmp.eq.s32.totalorder %s16, 0
      %p37 = por %p35, %p36
      %p38 = scmp.ne.s32.totalorder %s24, %s25
      %p39 = scmp.eq.s32.totalorder %s17, 3
      %p40 = por %p38, %p39
      %p42 = scmp.ne.s32.totalorder %s25, %s41
      %p43 = scmp.eq.s32.totalorder %s17, 0
      %p44 = por %p42, %p43
      %s46 = sadd.s32 %s45, 1
      %p49 = scmp.eq.s32.totalorder %s11, 3
      %p50 = scmp.ne.s32.totalorder %s45, %s47
      %p51 = scmp.eq.s32.totalorder %s11, 0
      %p52 = por %p50, %p51
      %p53 = scmp.ne.s32.totalorder %s45, %s47
      %p54 = scmp.eq.s32.totalorder %s16, 3
      %p55 = por %p53, %p54
      %p56 = scmp.ne.s32.totalorder %s47, %s48
      %p57 = scmp.eq.s32.totalorder %s16, 0
      %p58 = por %p56, %p57
      %p59 = scmp.ne.s32.totalorder %s47, %s48
      %p60 = scmp.eq.s32.totalorder %s17, 3
      %p61 = por %p59, %p60
      %p63 = scmp.ne.s32.totalorder %s48, %s62
      %p64 = scmp.eq.s32.totalorder %s17, 0
      %p65 = por %p63, %p64
      %s66 = ssub.s32 %s11, %s18
      %p67 = scmp.eq.s32.totalorder %s66, 0
      %s69 = sadd.s32 %s68, 1
      %s70 = scalar_select %p67, %s68, %s69
      %p73 = pneg %p67
      %p74 = scmp.eq.s32.totalorder %s11, 3
      %p75 = por %p73, %p74
      %p76 = scmp.ne.s32.totalorder %s68, %s71
      %p77 = scmp.eq.s32.totalorder %s11, 0
      %p78 = por %p76, %p77
      %p79 = scmp.ne.s32.totalorder %s68, %s71
      %p80 = scmp.eq.s32.totalorder %s16, 3
      %p81 = por %p79, %p80
      %p82 = scmp.ne.s32.totalorder %s71, %s72
      %p83 = scmp.eq.s32.totalorder %s16, 0
      %p84 = por %p82, %p83
      %p85 = scmp.ne.s32.totalorder %s71, %s72
      %p86 = scmp.eq.s32.totalorder %s17, 3
      %p87 = por %p85, %p86
      %p89 = scmp.ne.s32.totalorder %s72, %s88
      %p90 = scmp.eq.s32.totalorder %s17, 0
      %p91 = por %p89, %p90
      %p92 = scmp.le.s32.totalorder 1, %s11
      %p93 = scmp.lt.s32.totalorder %s11, 5
      %p94 = pnand %p92, %p93
      %p95 = pneg %p94
      // Predicated region
      $region9: #{tpu_custom_call.1} parent=5 // pred_check
        _
      $region10: #{tpu_custom_call.1} parent=5 // pred_check_branch
        %97 = sbr.rel (%p94) target = $region12
      $region11: #{tpu_custom_call.1} parent=5 // pred_region
        %s98 = ssub.s32 %s11, 1
        // Predicated region
        $region13: #{tpu_custom_call.1} parent=11 // pred_check
          %p99 = pneg %p58
        $region14: #{tpu_custom_call.1} parent=11 // pred_check_branch
          %101 = sbr.rel (%p99) target = $region16
        $region15: #{tpu_custom_call.1} parent=11 // pred_region
          _
        $region16: #{tpu_custom_call.1} parent=11 // pred_fallthru
          _
      $region12: #{tpu_custom_call.1} parent=5 // pred_fallthru
        _
      %p102 = scmp.lt.s32.totalorder %s11, 4
      // Predicated region
      $region17: #{tpu_custom_call.1} parent=5 // pred_check
        %p103 = pneg %p102
      $region18: #{tpu_custom_call.1} parent=5 // pred_check_branch
        %105 = sbr.rel (%p103) target = $region20
      $region19: #{tpu_custom_call.1} parent=5 // pred_region
        // Predicated region
        $region21: #{tpu_custom_call.1} parent=19 // pred_check
          %p106 = pneg %p31
        $region22: #{tpu_custom_call.1} parent=19 // pred_check_branch
          %108 = sbr.rel (%p106) target = $region24
        $region23: #{tpu_custom_call.1} parent=19 // pred_region
          %p109 = scmp.lt.s32.totalorder %s11, 3
          %s110 = scalar_select %p109, %s11, 3
          %s111 = smul.addr %s110, 4
          %s112 = scalar_lea.vmem %s0, %s111
        $region24: #{tpu_custom_call.1} parent=19 // pred_fallthru
          _
      $region20: #{tpu_custom_call.1} parent=5 // pred_fallthru
        _
      %p113 = scmp.le.s32.totalorder 1, %s11
      %p114 = scmp.lt.s32.totalorder %s11, 5
      %p115 = pnand %p113, %p114
      %p116 = pneg %p115
      // Predicated region
      $region25: #{tpu_custom_call.1} parent=5 // pred_check
        _
      $region26: #{tpu_custom_call.1} parent=5 // pred_check_branch
        %118 = sbr.rel (%p115) target = $region28
      $region27: #{tpu_custom_call.1} parent=5 // pred_region
        %s119 = ssub.s32 %s11, 1
        %p120 = scmp.lt.s32.totalorder %s16, 3
        %s121 = scalar_select %p120, %s16, 3
        %s122 = smul.addr %s121, 4
        %s123 = scalar_lea.vmem %s0, %s122
        %p124 = pneg %p37
        %p125 = pneg %p34
        %p126 = pneg %p58
        %p127 = pneg %p55
        %p128 = pneg %p84
        %p129 = pneg %p81
        %s130 = sand.u32 %s71, 1
        %s131 = scalar_lea.sflag [#allocation3], %s130
        %s132 = sand.u32 %s71, 1
        %s133 = smul.addr %s132, 4
        %s134 = scalar_lea.vmem [#allocation2], %s133
        %p135 = scmp.lt.s32.totalorder %s16, 3
        %s136 = scalar_select %p135, %s16, 3
        %s137 = smul.addr %s136, 4
        %s138 = scalar_lea.vmem %s0, %s137
        %v140 = vld [vmem:[%s138] sm:$0xf]
        %v141 = vld [vmem:[%s1] sm:$0xf]
        %v142 = vld [vmem:[%s1 + $0x4] sm:$0xf]
        %v145 = vunpack.c.l.b16 %v141
        %v146 = vunpack.c.l.b16 %v142
        %v147 = vpack.c.b16 %v146, %v145
        %vm149 = vcmask 130048
        %v151 = vsel %vm149, %v140, 0
        %153 = vmatprep.subr.bf16.mxu0 0
        %154 = vmatpush1.bf16.msra.mxu0 0
        %155 = vmatprep.subr.bf16.mxu0 0
        %156 = vmatpush1.bf16.msra.mxu0 0
        %157 = vmatprep.subr.bf16.mxu0 0
        %158 = vmatpush1.bf16.msra.mxu0 0
        %159 = vmatprep.subr.bf16.mxu0 0
        %160 = vmatpush1.bf16.msra.mxu0 0
        %161 = vmatprep.subr.bf16.mxu0 0
        %162 = vmatpush1.bf16.msra.mxu0 0
        %163 = vmatprep.subr.bf16.mxu0 0
        %164 = vmatpush1.bf16.msra.mxu0 0
        %165 = vmatprep.subr.bf16.mxu0 0
        %166 = vmatpush1.bf16.msra.mxu0 0
        %167 = vmatprep.subr.bf16.mxu0 0
        %168 = vmatpush1.bf16.msra.mxu0 %v147
        %169 = vmatprep.subr.bf16.mxu0 0
        %170 = vmatpush2.bf16.msra.mxu0 0
        %171 = vmatprep.subr.bf16.mxu0 0
        %172 = vmatpush2.bf16.msra.mxu0 0
        %173 = vmatprep.subr.bf16.mxu0 0
        %174 = vmatpush2.bf16.msra.mxu0 0
        %175 = vmatprep.subr.bf16.mxu0 0
        %176 = vmatpush2.bf16.msra.mxu0 0
        %177 = vmatprep.subr.bf16.mxu0 0
        %178 = vmatpush2.bf16.msra.mxu0 0
        %179 = vmatprep.subr.bf16.mxu0 0
        %180 = vmatpush2.bf16.msra.mxu0 0
        %181 = vmatprep.subr.bf16.mxu0 0
        %182 = vmatpush2.bf16.msra.mxu0 0
        %183 = vmatprep.subr.bf16.mxu0 0
        %184 = vmatpush2.bf16.msra.mxu0 0
        %185 = vmatprep.mubr.bf16.mxu0 0
        %186 = vmatmul.mubr.bf16.gmra.mxu0 %v151
        %v187 = vpop.f32.mrf.mxu0
        %v188 = vadd.f32 0.0, %v187
        %v189 = vpop.f32.mrf.mxu0
        %v190 = vpop.f32.mrf.mxu0
        %v191 = vpop.f32.mrf.mxu0
        %192 = vdwg.mxu0
        %v193 = vpack.c.bf16 %v188, %v188
        %194 = vst [vmem:[%s134] sm:$0xf] %v193
        %s195 = sand.u32 %s71, 1
        %s196 = scalar_lea.sflag [#allocation3], %s195
        %s197 = sand.u32 %s71, 1
        %s198 = smul.addr %s197, 4
        %s199 = scalar_lea.vmem [#allocation2], %s198
        // Predicated region
        $region29: #{tpu_custom_call.1} parent=27 // pred_check
          %p200 = pneg %p81
        $region30: #{tpu_custom_call.1} parent=27 // pred_check_branch
          %202 = sbr.rel (%p200) target = $region32
        $region31: #{tpu_custom_call.1} parent=27 // pred_region
          %s204 = ssub.s32 64, 64
          %205 = vsyncadd %s196, %s204
          %s206 = smul.addr %s16, 64
          %s207 = scalar_lea.hbm %s2, %s206
          %s209 = sshll.u32 %s199, 4
          %s210 = int_to_ptr.vmem [resolvable:$true] %s209
          %212 = dma.vmem_to_hbm [thread:$0]  %s210, 64, %s207, %s196
        $region32: #{tpu_custom_call.1} parent=27 // pred_fallthru
          _
      $region28: #{tpu_custom_call.1} parent=5 // pred_fallthru
        _
      %p213 = scmp.le.s32.totalorder 2, %s11
      // Predicated region
      $region33: #{tpu_custom_call.1} parent=5 // pred_check
        %p214 = pneg %p213
      $region34: #{tpu_custom_call.1} parent=5 // pred_check_branch
        %216 = sbr.rel (%p214) target = $region36
      $region35: #{tpu_custom_call.1} parent=5 // pred_region
        %s217 = ssub.s32 %s11, 2
        // Predicated region
        $region37: #{tpu_custom_call.1} parent=35 // pred_check
          %p218 = pneg %p87
        $region38: #{tpu_custom_call.1} parent=35 // pred_check_branch
          %220 = sbr.rel (%p218) target = $region40
        $region39: #{tpu_custom_call.1} parent=35 // pred_region
          %s221 = sand.u32 %s72, 1
          %s222 = scalar_lea.sflag [#allocation3], %s221
          %s223 = sand.u32 %s72, 1
          %s224 = smul.addr %s223, 4
          %s225 = scalar_lea.vmem [#allocation2], %s224
          %226 = dma.done %s222, 64
        $region40: #{tpu_custom_call.1} parent=35 // pred_fallthru
          _
      $region36: #{tpu_custom_call.1} parent=5 // pred_fallthru
        _
    $region6: #{tpu_custom_call.1} parent=1 // loop_footer
      %s15 = sadd.s32 1, %s11
    $region7: #{tpu_custom_call.1} parent=1 // loop_footer_branch
      %10 = sbr.rel target = $region3
    $region8: #{tpu_custom_call.1} parent=1 // loop_exit
      _
    %227 = vsyncpa [#allocation3], 1
    %s228 = scalar_lea.sflag [#allocation3], 1
    %229 = vsyncpa %s228, 1

</llo_original>
